<compile_context>
chip_gen: v6e
topology: v6e:2x2x1
jax: 0.10.0
libtpu: 0.0.40
codegen_flags: <defaults>
</compile_context>

<pallas_src>
from functools import partial

import jax
import jax.numpy as jnp
from jax.experimental import pallas as pl
from jax.experimental.pallas import tpu as pltpu


def _round_up(x, m):
    return ((x + m - 1) // m) * m


def _pick_batch_tile(B, tb_max):
    """Batch tile: full batch for tiny B, otherwise >=2 grid steps (v7x has
    2 TensorCores), a multiple of 8 for sublane tiling, capped at tb_max."""
    if B <= 8:
        return B
    tb = _round_up(-(-B // 2), 8)  # ceil(B/2) rounded up to a multiple of 8
    return min(tb, tb_max)


def mlp_kernel(x_ref, w1_ref, b1_ref, w2_ref, b2_ref, o_ref):
    # x_ref : (TB, F)   -- F tiny (e.g. 2), unpadded
    # w1_ref: (F, Hp), b1_ref: (1, Hp)
    # w2_ref: (Hp, Cp), b2_ref: (1, Cp)
    # o_ref : (TB, C)   -- C tiny (e.g. 3), unpadded
    x = x_ref[...]
    w1 = w1_ref[...]
    F = x.shape[1]
    C = o_ref.shape[1]

    # fc1 on the VPU: h = sum_f x[:, f] * w1[f, :] + b1  (F broadcast FMAs).
    acc = x[:, 0:1] * w1[0:1, :]
    for f in range(1, F):                      # static, tiny trip count
        acc = acc + x[:, f:f + 1] * w1[f:f + 1, :]
    h = jnp.maximum(acc + b1_ref[...], 0.0)    # (TB, Hp)

    # fc2 on the MXU with lane-padded (Hp, Cp) weights; store only the C real
    # class columns (output block is (TB, C), so no post-kernel slice pass).
    out = jnp.dot(h, w2_ref[...], preferred_element_type=jnp.float32) + b2_ref[...]
    o_ref[...] = out[:, :C]


def prepare_params(w1, b1, w2, b2):
    """Pad weights/biases to lane-friendly shapes ONCE (not per forward).

    w1: (F, H), b1: (H,), w2: (H, C), b2: (C,) -- (in, out) layout, i.e.
    transposed relative to torch.nn.Linear.weight.
    NOTE: re-run whenever the underlying params change (training).
    """
    F, H = w1.shape
    C = w2.shape[1]
    Hp = _round_up(H, 128)
    Cp = _round_up(C, 128)

    w1p = jnp.zeros((F, Hp), jnp.float32).at[:, :H].set(w1.astype(jnp.float32))
    b1p = jnp.zeros((1, Hp), jnp.float32).at[0, :H].set(b1.astype(jnp.float32))
    w2p = jnp.zeros((Hp, Cp), jnp.float32).at[:H, :C].set(w2.astype(jnp.float32))
    b2p = jnp.zeros((1, Cp), jnp.float32).at[0, :C].set(b2.astype(jnp.float32))
    return (w1p, b1p, w2p, b2p), (F, H, C)


@partial(jax.jit, static_argnames=("dims", "tb_max"))
def net_forward(x, padded_params, dims, tb_max=2048):
    """x: (B, F) -> (B, C), using pre-padded params from prepare_params()."""
    w1p, b1p, w2p, b2p = padded_params
    F, H, C = dims
    B = x.shape[0]
    Hp = w1p.shape[1]
    Cp = w2p.shape[1]

    x = x.astype(jnp.float32)          # no feature padding, no batch padding

    TB = _pick_batch_tile(B, tb_max)
    grid = (pl.cdiv(B, TB),)

    flops = 2 * B * (F * Hp + Hp * Cp)
    bytes_accessed = 4 * (B * F + F * Hp + Hp + Hp * Cp + Cp + B * C)

    def resident(shape):
        # Constant index_map -> stays VMEM-resident across grid steps; a single
        # buffer is enough (never re-fetched).
        return pl.BlockSpec(shape, lambda i: (0, 0),
                            pipeline_mode=pl.Buffered(buffer_count=1))

    return pl.pallas_call(
        mlp_kernel,
        out_shape=jax.ShapeDtypeStruct((B, C), jnp.float32),
        grid=grid,
        in_specs=[
            pl.BlockSpec((TB, F), lambda i: (i, 0)),   # x tile, double-buffered
            resident((F, Hp)),                         # w1
            resident((1, Hp)),                         # b1
            resident((Hp, Cp)),                        # w2
            resident((1, Cp)),                         # b2
        ],
        out_specs=pl.BlockSpec((TB, C), lambda i: (i, 0)),
        compiler_params=pltpu.CompilerParams(
            dimension_semantics=("parallel",),  # shards batch across TCs on v7x
        ),
        cost_estimate=pl.CostEstimate(
            flops=flops, transcendentals=0, bytes_accessed=bytes_accessed
        ),
    )(x, w1p, b1p, w2p, b2p)


def init_params(key, n_features, n_classes, hidden=10):
    """Deterministic params matching nn.Linear shapes (stored as (in, out))."""
    k1, k2, k3, k4 = jax.random.split(key, 4)
    lim1 = 1.0 / jnp.sqrt(float(n_features))
    lim2 = 1.0 / jnp.sqrt(float(hidden))
    w1 = jax.random.uniform(k1, (n_features, hidden), jnp.float32, -lim1, lim1)
    b1 = jax.random.uniform(k2, (hidden,), jnp.float32, -lim1, lim1)
    w2 = jax.random.uniform(k3, (hidden, n_classes), jnp.float32, -lim2, lim2)
    b2 = jax.random.uniform(k4, (n_classes,), jnp.float32, -lim2, lim2)
    return w1, b1, w2, b2


if __name__ == "__main__":
    # Net(n_features=2, n_classes=3) as in the blobs test; batch=2.
    n_features, n_classes, hidden, batch = 2, 3, 10, 2

    key = jax.random.PRNGKey(0)
    kx, kp = jax.random.split(key)
    x = jax.random.normal(kx, (batch, n_features), jnp.float32)
    w1, b1, w2, b2 = init_params(kp, n_features, n_classes, hidden)

    # Padding done ONCE, outside the per-call forward path.
    padded_params, dims = prepare_params(w1, b1, w2, b2)

    out = net_forward(x, padded_params, dims)
    jax.block_until_ready(out)

    ref = jnp.maximum(x @ w1 + b1, 0.0) @ w2 + b2
    assert out.shape == (batch, n_classes)
    assert jnp.allclose(out, ref, atol=1e-5, rtol=1e-5)

    # Second small check exercising the multi-step grid + partial last block.
    xb = jax.random.normal(jax.random.PRNGKey(1), (20, n_features), jnp.float32)
    outb = net_forward(xb, padded_params, dims)
    jax.block_until_ready(outb)
    refb = jnp.maximum(xb @ w1 + b1, 0.0) @ w2 + b2
    assert outb.shape == (20, n_classes)
    assert jnp.allclose(outb, refb, atol=1e-5, rtol=1e-5)

    print("KERNEL_OK")
</pallas_src>

<mosaic_0001>
module attributes {stable_mosaic.version = 11 : i64} {
  func.func @mlp_kernel(%arg0: i32, %arg1: memref<2x2xf32, #tpu.memory_space<vmem>>, %arg2: memref<2x128xf32, #tpu.memory_space<vmem>>, %arg3: memref<1x128xf32, #tpu.memory_space<vmem>>, %arg4: memref<128x128xf32, #tpu.memory_space<vmem>>, %arg5: memref<1x128xf32, #tpu.memory_space<vmem>>, %arg6: memref<2x3xf32, #tpu.memory_space<vmem>>) attributes {dimension_semantics = [#tpu.dimension_semantics<parallel>], iteration_bounds = array<i64: 1>, scalar_prefetch = 0 : i64, scratch_operands = 0 : i64, tpu.core_type = #tpu.core_type<tc>, window_params = [{transform_indices = @transform_0, window_bounds = array<i64: 2, 2>}, {pipeline_mode = #tpu.pipeline_mode<synchronous>, transform_indices = @transform_1, window_bounds = array<i64: 2, 128>}, {pipeline_mode = #tpu.pipeline_mode<synchronous>, transform_indices = @transform_2, window_bounds = array<i64: 1, 128>}, {pipeline_mode = #tpu.pipeline_mode<synchronous>, transform_indices = @transform_3, window_bounds = array<i64: 128, 128>}, {pipeline_mode = #tpu.pipeline_mode<synchronous>, transform_indices = @transform_4, window_bounds = array<i64: 1, 128>}, {transform_indices = @transform_5, window_bounds = array<i64: 2, 3>}]} {
    %c0 = arith.constant 0 : index
    %c0_0 = arith.constant 0 : index
    %0 = vector.load %arg1[%c0, %c0_0] : memref<2x2xf32, #tpu.memory_space<vmem>>, vector<2x2xf32>
    %c0_1 = arith.constant 0 : index
    %c0_2 = arith.constant 0 : index
    %1 = vector.load %arg2[%c0_1, %c0_2] : memref<2x128xf32, #tpu.memory_space<vmem>>, vector<2x128xf32>
    %2 = vector.extract_strided_slice %0 {offsets = [0, 0], sizes = [2, 1], strides = [1, 1]} : vector<2x2xf32> to vector<2x1xf32>
    %3 = vector.extract_strided_slice %1 {offsets = [0, 0], sizes = [1, 128], strides = [1, 1]} : vector<2x128xf32> to vector<1x128xf32>
    %4 = vector.broadcast %2 : vector<2x1xf32> to vector<2x128xf32>
    %5 = vector.broadcast %3 : vector<1x128xf32> to vector<2x128xf32>
    %6 = arith.mulf %4, %5 : vector<2x128xf32>
    %7 = vector.extract_strided_slice %0 {offsets = [0, 1], sizes = [2, 1], strides = [1, 1]} : vector<2x2xf32> to vector<2x1xf32>
    %8 = vector.extract_strided_slice %1 {offsets = [1, 0], sizes = [1, 128], strides = [1, 1]} : vector<2x128xf32> to vector<1x128xf32>
    %9 = vector.broadcast %7 : vector<2x1xf32> to vector<2x128xf32>
    %10 = vector.broadcast %8 : vector<1x128xf32> to vector<2x128xf32>
    %11 = arith.mulf %9, %10 : vector<2x128xf32>
    %12 = arith.addf %6, %11 : vector<2x128xf32>
    %c0_3 = arith.constant 0 : index
    %c0_4 = arith.constant 0 : index
    %13 = vector.load %arg3[%c0_3, %c0_4] : memref<1x128xf32, #tpu.memory_space<vmem>>, vector<1x128xf32>
    %14 = vector.broadcast %13 : vector<1x128xf32> to vector<2x128xf32>
    %15 = arith.addf %12, %14 : vector<2x128xf32>
    %cst = arith.constant 0.000000e+00 : f32
    %16 = vector.broadcast %cst : f32 to vector<2x128xf32>
    %17 = arith.maximumf %15, %16 : vector<2x128xf32>
    %c0_5 = arith.constant 0 : index
    %c0_6 = arith.constant 0 : index
    %18 = vector.load %arg4[%c0_5, %c0_6] : memref<128x128xf32, #tpu.memory_space<vmem>>, vector<128x128xf32>
    %cst_7 = arith.constant dense<0.000000e+00> : vector<2x128xf32>
    %19 = tpu.matmul %17, %18, %cst_7 {dimension_numbers = #tpu.dot_dimension_numbers<[1], [0], [0], [1], [0, 0, 1, 1], [], []>} : vector<2x128xf32>, vector<128x128xf32>, vector<2x128xf32> -> vector<2x128xf32>
    %c0_8 = arith.constant 0 : index
    %c0_9 = arith.constant 0 : index
    %20 = vector.load %arg5[%c0_8, %c0_9] : memref<1x128xf32, #tpu.memory_space<vmem>>, vector<1x128xf32>
    %21 = vector.broadcast %20 : vector<1x128xf32> to vector<2x128xf32>
    %22 = arith.addf %19, %21 : vector<2x128xf32>
    %23 = vector.extract_strided_slice %22 {offsets = [0, 0], sizes = [2, 3], strides = [1, 1]} : vector<2x128xf32> to vector<2x3xf32>
    %c0_10 = arith.constant 0 : index
    %c0_11 = arith.constant 0 : index
    %24 = vector.load %arg6[%c0_10, %c0_11] : memref<2x3xf32, #tpu.memory_space<vmem>>, vector<2x3xf32>
    tpu.vector_store %arg6[%c0_10, %c0_11], %23 {strides = array<i32>} : memref<2x3xf32, #tpu.memory_space<vmem>>, vector<2x3xf32>,
    return
  }
  func.func @transform_0(%arg0: i32) -> (i32, i32) {
    %c0_i32 = arith.constant 0 : i32
    %c0_i32_0 = arith.constant 0 : i32
    return %arg0, %c0_i32 : i32, i32
  }
  func.func @transform_1(%arg0: i32) -> (i32, i32) {
    %c0_i32 = arith.constant 0 : i32
    %c0_i32_0 = arith.constant 0 : i32
    %c0_i32_1 = arith.constant 0 : i32
    return %c0_i32, %c0_i32_0 : i32, i32
  }
  func.func @transform_2(%arg0: i32) -> (i32, i32) {
    %c0_i32 = arith.constant 0 : i32
    %c0_i32_0 = arith.constant 0 : i32
    %c0_i32_1 = arith.constant 0 : i32
    return %c0_i32, %c0_i32_0 : i32, i32
  }
  func.func @transform_3(%arg0: i32) -> (i32, i32) {
    %c0_i32 = arith.constant 0 : i32
    %c0_i32_0 = arith.constant 0 : i32
    %c0_i32_1 = arith.constant 0 : i32
    return %c0_i32, %c0_i32_0 : i32, i32
  }
  func.func @transform_4(%arg0: i32) -> (i32, i32) {
    %c0_i32 = arith.constant 0 : i32
    %c0_i32_0 = arith.constant 0 : i32
    %c0_i32_1 = arith.constant 0 : i32
    return %c0_i32, %c0_i32_0 : i32, i32
  }
  func.func @transform_5(%arg0: i32) -> (i32, i32) {
    %c0_i32 = arith.constant 0 : i32
    %c0_i32_0 = arith.constant 0 : i32
    return %arg0, %c0_i32 : i32, i32
  }
}

</mosaic_0001>

<llo_original>
// kernel: net_forward.1
$region0: #{net_forward.1}
  #allocation0 [shape = 'u32[]', space=smem, size = 0x4, offset = 0x4, fixed_abs, tag = 'smem constant byte address 0x4 - core index']
  #allocation1 [shape = 'u32[144,128]{1,0:T(1,128)}', space=vmem, size = 0x12000, scoped, tag = 'internal scratch']
  %s0 = inlined_call_operand.hbm [shape: f32[2,2], index: 0, kind: input, shape index: {}]
  %s1 = inlined_call_operand.hbm [shape: f32[2,128], index: 1, kind: input, shape index: {}]
  %s2 = inlined_call_operand.vmem [shape: f32[1,128], index: 2, kind: input, shape index: {}]
  %s3 = inlined_call_operand.hbm [shape: f32[128,128], index: 3, kind: input, shape index: {}]
  %s4 = inlined_call_operand.vmem [shape: f32[1,128], index: 4, kind: input, shape index: {}]
  %s5 = inlined_call_operand.hbm [shape: f32[2,3], index: 5, kind: output, shape index: {}]
  %s6 = sld [smem:[#allocation0]]
  $region42: #{net_forward.1} parent=0
    _
  %s8 = ssub.s32 1, %s6
  %s9 = scalar_select 0, %s8, %s6
  $region1: #{net_forward.1} parent=0
    #allocation2 [shape = 'u8[1024]{0}', space=vmem, size = 0x400, scoped, tag = 'input window, operand 0, single buffered']
    #allocation3 [shape = 's32[1]{0}', space=sflag, size = 0x4, scoped, tag = 'scoped memory for net_forward.1']
    #allocation4 [shape = 's32[1]{0}', space=sflag, size = 0x4, scoped, tag = 'scoped memory for net_forward.1']
    #allocation5 [shape = 'u8[1024]{0}', space=vmem, size = 0x400, scoped, tag = 'input window, operand 1, single buffered']
    #allocation6 [shape = 's32[1]{0}', space=sflag, size = 0x4, scoped, tag = 'scoped memory for net_forward.1']
    #allocation7 [shape = 'u8[65536]{0}', space=vmem, size = 0x10000, scoped, tag = 'input window, operand 3, single buffered']
    #allocation8 [shape = 'u8[1024]{0}', space=vmem, size = 0x400, scoped, tag = 'output window, operand 0, single buffered']
    %10 = vsyncpa [#allocation3], 0
    %11 = vsyncpa [#allocation6], 0
    %12 = vsyncpa [#allocation4], 0
    // Predicated region
    $region2: #{net_forward.1} parent=1 // pred_check
      _
    $region3: #{net_forward.1} parent=1 // pred_check_branch
      %14 = sbr.rel (0) target = $region5
    $region4: #{net_forward.1} parent=1 // pred_region
      %s16 = ssub.s32 32, 32
      %17 = vsyncadd [#allocation3], %s16
      %s19 = sshll.u32 [#allocation2], 4
      %s20 = int_to_ptr.vmem [resolvable:$true] %s19
      %22 = dma.hbm_to_vmem [thread:$0]  %s0, 32, %s20, [#allocation3]
    $region5: #{net_forward.1} parent=1 // pred_fallthru
      _
    // Predicated region
    $region6: #{net_forward.1} parent=1 // pred_check
      _
    $region7: #{net_forward.1} parent=1 // pred_check_branch
      %24 = sbr.rel (0) target = $region9
    $region8: #{net_forward.1} parent=1 // pred_region
      %s26 = ssub.s32 32, 32
      %27 = vsyncadd [#allocation6], %s26
      %s29 = sshll.u32 [#allocation5], 4
      %s30 = int_to_ptr.vmem [resolvable:$true] %s29
      %32 = dma.hbm_to_vmem [thread:$0]  %s1, 32, %s30, [#allocation6]
    $region9: #{net_forward.1} parent=1 // pred_fallthru
      _
    // Predicated region
    $region10: #{net_forward.1} parent=1 // pred_check
      _
    $region11: #{net_forward.1} parent=1 // pred_check_branch
      %34 = sbr.rel (0) target = $region13
    $region12: #{net_forward.1} parent=1 // pred_region
      _
    $region13: #{net_forward.1} parent=1 // pred_fallthru
      _
    // Predicated region
    $region14: #{net_forward.1} parent=1 // pred_check
      _
    $region15: #{net_forward.1} parent=1 // pred_check_branch
      %36 = sbr.rel (0) target = $region17
    $region16: #{net_forward.1} parent=1 // pred_region
      %s38 = ssub.s32 2048, 2048
      %39 = vsyncadd [#allocation6], %s38
      %s40 = sshll.u32 [#allocation7], 4
      %s41 = int_to_ptr.vmem [resolvable:$true] %s40
      %46 = dma.hbm_to_vmem [thread:$0]  %s3, 2048, %s41, [#allocation6], 128, 128, 8
    $region17: #{net_forward.1} parent=1 // pred_fallthru
      _
    // Predicated region
    $region18: #{net_forward.1} parent=1 // pred_check
      _
    $region19: #{net_forward.1} parent=1 // pred_check_branch
      %48 = sbr.rel (0) target = $region21
    $region20: #{net_forward.1} parent=1 // pred_region
      _
    $region21: #{net_forward.1} parent=1 // pred_fallthru
      _
    // Predicated region
    $region22: #{net_forward.1} parent=1 // pred_check
      _
    $region23: #{net_forward.1} parent=1 // pred_check_branch
      %50 = sbr.rel (0) target = $region25
    $region24: #{net_forward.1} parent=1 // pred_region
      %51 = dma.done [#allocation3], 32
    $region25: #{net_forward.1} parent=1 // pred_fallthru
      _
    // Predicated region
    $region26: #{net_forward.1} parent=1 // pred_check
      _
    $region27: #{net_forward.1} parent=1 // pred_check_branch
      %53 = sbr.rel (0) target = $region29
    $region28: #{net_forward.1} parent=1 // pred_region
      %54 = dma.done [#allocation6], 32
    $region29: #{net_forward.1} parent=1 // pred_fallthru
      _
    // Predicated region
    $region30: #{net_forward.1} parent=1 // pred_check
      _
    $region31: #{net_forward.1} parent=1 // pred_check_branch
      %56 = sbr.rel (0) target = $region33
    $region32: #{net_forward.1} parent=1 // pred_region
      %57 = dma.done [#allocation6], 2048
    $region33: #{net_forward.1} parent=1 // pred_fallthru
      _
    %v58 = vld [vmem:[#allocation2] sm:$0x3]
    %v59 = vld [vmem:[#allocation5] sm:$0x3]
    %61 = vset.pattern.permute.xlu0 0
    %62 = vperm.xlu0 %61, %v58
    %v63 = vpop.permute.xlu0 %62
    %v65 = vlaneseq
    %v66 = vshrl.u32 %v65, 7
    %v67 = vsub.s32 0, %v66
    %v68 = vrot.slane %v59, %v67
    %v69 = vmul.f32 %v63, %v68
    %70 = vset.pattern.permute.xlu0 1
    %71 = vperm.xlu0 %70, %v58
    %v72 = vpop.permute.xlu0 %71
    %v74 = vlaneseq
    %v75 = vshrl.u32 %v74, 7
    %v76 = vsub.s32 1, %v75
    %v77 = vrot.slane %v59, %v76
    %v78 = vmul.f32 %v72, %v77
    %v79 = vadd.f32 %v69, %v78
    %v80 = vld [vmem:[%s2] sm:$0x1]
    %v82 = vlaneseq
    %v83 = vshrl.u32 %v82, 7
    %v84 = vsub.s32 0, %v83
    %v85 = vrot.slane %v80, %v84
    %v87 = vadd.f32 %v79, %v85
    %v88 = vmax.f32 %v87, 0.0
    %v89 = vld [vmem:[#allocation7] sm:$0xff]
    %v90 = vld [vmem:[#allocation7 + $0x8] sm:$0xff]
    %v91 = vld [vmem:[#allocation7 + $0x10] sm:$0xff]
    %v92 = vld [vmem:[#allocation7 + $0x18] sm:$0xff]
    %v93 = vld [vmem:[#allocation7 + $0x20] sm:$0xff]
    %v94 = vld [vmem:[#allocation7 + $0x28] sm:$0xff]
    %v95 = vld [vmem:[#allocation7 + $0x30] sm:$0xff]
    %v96 = vld [vmem:[#allocation7 + $0x38] sm:$0xff]
    %v97 = vld [vmem:[#allocation7 + $0x40] sm:$0xff]
    %v98 = vld [vmem:[#allocation7 + $0x48] sm:$0xff]
    %v99 = vld [vmem:[#allocation7 + $0x50] sm:$0xff]
    %v100 = vld [vmem:[#allocation7 + $0x58] sm:$0xff]
    %v101 = vld [vmem:[#allocation7 + $0x60] sm:$0xff]
    %v102 = vld [vmem:[#allocation7 + $0x68] sm:$0xff]
    %v103 = vld [vmem:[#allocation7 + $0x70] sm:$0xff]
    %v104 = vld [vmem:[#allocation7 + $0x78] sm:$0xff]
    %v105 = vld [vmem:[%s4] sm:$0x1]
    %v107 = vlaneseq
    %v108 = vshrl.u32 %v107, 7
    %v109 = vsub.s32 0, %v108
    %v110 = vrot.slane %v105, %v109
    %112 = vmatprep.subr.mxu0 0.0
    %113 = vmatpush1.msra.mxu0 %v104
    %114 = vmatprep.subr.mxu0 0.0
    %115 = vmatpush1.msra.mxu0 %v103
    %116 = vmatprep.subr.mxu0 0.0
    %117 = vmatpush1.msra.mxu0 %v102
    %118 = vmatprep.subr.mxu0 0.0
    %119 = vmatpush1.msra.mxu0 %v101
    %120 = vmatprep.subr.mxu0 0.0
    %121 = vmatpush1.msra.mxu0 %v100
    %122 = vmatprep.subr.mxu0 0.0
    %123 = vmatpush1.msra.mxu0 %v99
    %124 = vmatprep.subr.mxu0 0.0
    %125 = vmatpush1.msra.mxu0 %v98
    %126 = vmatprep.subr.mxu0 0.0
    %127 = vmatpush1.msra.mxu0 %v97
    %128 = vmatprep.subr.mxu0 0.0
    %129 = vmatpush1.msra.mxu0 %v96
    %130 = vmatprep.subr.mxu0 0.0
    %131 = vmatpush1.msra.mxu0 %v95
    %132 = vmatprep.subr.mxu0 0.0
    %133 = vmatpush1.msra.mxu0 %v94
    %134 = vmatprep.subr.mxu0 0.0
    %135 = vmatpush1.msra.mxu0 %v93
    %136 = vmatprep.subr.mxu0 0.0
    %137 = vmatpush1.msra.mxu0 %v92
    %138 = vmatprep.subr.mxu0 0.0
    %139 = vmatpush1.msra.mxu0 %v91
    %140 = vmatprep.subr.mxu0 0.0
    %141 = vmatpush1.msra.mxu0 %v90
    %142 = vmatprep.subr.mxu0 0.0
    %143 = vmatpush1.msra.mxu0 %v89
    %144 = vmatprep.subr.mxu0 0.0
    %145 = vmatpush2.msra.mxu0 0.0
    %146 = vmatprep.subr.mxu0 0.0
    %147 = vmatpush2.msra.mxu0 0.0
    %148 = vmatprep.subr.mxu0 0.0
    %149 = vmatpush2.msra.mxu0 0.0
    %150 = vmatprep.subr.mxu0 0.0
    %151 = vmatpush2.msra.mxu0 0.0
    %152 = vmatprep.subr.mxu0 0.0
    %153 = vmatpush2.msra.mxu0 0.0
    %154 = vmatprep.subr.mxu0 0.0
    %155 = vmatpush2.msra.mxu0 0.0
    %156 = vmatprep.subr.mxu0 0.0
    %157 = vmatpush2.msra.mxu0 0.0
    %158 = vmatprep.subr.mxu0 0.0
    %159 = vmatpush2.msra.mxu0 0.0
    %160 = vmatprep.subr.mxu0 0.0
    %161 = vmatpush2.msra.mxu0 0.0
    %162 = vmatprep.subr.mxu0 0.0
    %163 = vmatpush2.msra.mxu0 0.0
    %164 = vmatprep.subr.mxu0 0.0
    %165 = vmatpush2.msra.mxu0 0.0
    %166 = vmatprep.subr.mxu0 0.0
    %167 = vmatpush2.msra.mxu0 0.0
    %168 = vmatprep.subr.mxu0 0.0
    %169 = vmatpush2.msra.mxu0 0.0
    %170 = vmatprep.subr.mxu0 0.0
    %171 = vmatpush2.msra.mxu0 0.0
    %172 = vmatprep.subr.mxu0 0.0
    %173 = vmatpush2.msra.mxu0 0.0
    %174 = vmatprep.subr.mxu0 0.0
    %175 = vmatpush2.msra.mxu0 0.0
    %176 = vmatprep.mubr.f32.mxu0 0.0
    %177 = vmatmul.mubr.f32.gmra.mxu0 %v88
    %v178 = vpop.f32.mrf.mxu0
    %v179 = vadd.f32 %v110, %v178
    %v180 = vpop.f32.mrf.mxu0
    %181 = vdwg.mxu0
    %vm182 = vcmask 17408
    %183 = vst.msk [vmem:[#allocation8] sm:$0x3] %vm182, %v179
    // Predicated region
    $region34: #{net_forward.1} parent=1 // pred_check
      _
    $region35: #{net_forward.1} parent=1 // pred_check_branch
      %185 = sbr.rel (0) target = $region37
    $region36: #{net_forward.1} parent=1 // pred_region
      %s187 = ssub.s32 32, 32
      %188 = vsyncadd [#allocation4], %s187
      %s190 = sshll.u32 [#allocation8], 4
      %s191 = int_to_ptr.vmem [resolvable:$true] %s190
      %193 = dma.vmem_to_hbm [thread:$0]  %s191, 32, %s5, [#allocation4]
    $region37: #{net_forward.1} parent=1 // pred_fallthru
      _
    // Predicated region
    $region38: #{net_forward.1} parent=1 // pred_check
      _
    $region39: #{net_forward.1} parent=1 // pred_check_branch
      %195 = sbr.rel (0) target = $region41
    $region40: #{net_forward.1} parent=1 // pred_region
      %196 = dma.done [#allocation4], 32
    $region41: #{net_forward.1} parent=1 // pred_fallthru
      _
    %197 = vsyncpa [#allocation3], 1
    %198 = vsyncpa [#allocation6], 1
    %199 = vsyncpa [#allocation4], 1

</llo_original>
